<compile_context>
chip_gen: v5e
topology: v5e:2x2
jax: 0.10.0
libtpu: 0.0.40
codegen_flags: <defaults>
</compile_context>

<pallas_src>
import functools
import math

import jax
import jax.numpy as jnp
from jax import lax
from jax.experimental import pallas as pl
from jax.experimental.pallas import tpu as pltpu

LN_EPS = 1e-8        # LayerNorm eps (TF-style, inside sqrt)
PSA_EPS = 1e-12      # ProbSparseAttention eps
NEG_INF = -100000.0  # masked_fill value used by the reference code

_VMEM_LIMIT = None


def _vmem_limit():
    """Scoped-VMEM cap: 3/4 of physical (capped at 100 MiB), 48 MiB fallback."""
    global _VMEM_LIMIT
    if _VMEM_LIMIT is None:
        try:
            cap = int(pltpu.get_tpu_info().vmem_capacity_bytes)
            _VMEM_LIMIT = min((cap * 3) // 4, 100 * 1024 * 1024)
        except Exception:
            _VMEM_LIMIT = 48 * 1024 * 1024
    return _VMEM_LIMIT


def _cp(sem=("parallel",)):
    return pltpu.CompilerParams(dimension_semantics=sem,
                                vmem_limit_bytes=_vmem_limit())


def _tile_rows(M, target=1024):
    """Row-tile: the whole M when it fits the target (single grid step -> no
    per-step overhead), otherwise the largest multiple of 8 <= target."""
    if M <= target:
        return M
    return max(8, (target // 8) * 8)


def _ln(x, w, b):
    mu = jnp.mean(x, axis=-1, keepdims=True)
    var = jnp.mean((x - mu) ** 2, axis=-1, keepdims=True)
    return w * ((x - mu) * lax.rsqrt(var + LN_EPS)) + b


# ----------------------- standalone LayerNorm (store=False tail only) -----------------------
def _layernorm_kernel(x_ref, w_ref, b_ref, o_ref):
    o_ref[...] = _ln(x_ref[...], w_ref[...], b_ref[...])


def layernorm(x, w, b):
    shp = x.shape
    D = shp[-1]
    x2 = x.reshape(-1, D).astype(jnp.float32)
    M = x2.shape[0]
    tm = _tile_rows(M)
    out = pl.pallas_call(
        _layernorm_kernel,
        out_shape=jax.ShapeDtypeStruct((M, D), jnp.float32),
        grid=(pl.cdiv(M, tm),),
        in_specs=[
            pl.BlockSpec((tm, D), lambda i: (i, 0)),
            pl.BlockSpec((1, D), lambda i: (0, 0)),
            pl.BlockSpec((1, D), lambda i: (0, 0)),
        ],
        out_specs=pl.BlockSpec((tm, D), lambda i: (i, 0)),
        compiler_params=_cp(),
    )(x2, w, b)
    return out.reshape(shp)


# ----------------------- fused Q-LayerNorm + QKV projection -----------------------
def _lnqkv_kernel(x_ref, lnw_ref, lnb_ref, wq_ref, wkv_ref, b_ref, o_ref,
                  *, split_store):
    D = wq_ref.shape[1]
    x = x_ref[...]                                              # (tm, D) f32
    xn = _ln(x, lnw_ref[...], lnb_ref[...])
    q = jnp.dot(xn.astype(jnp.bfloat16), wq_ref[...],
                preferred_element_type=jnp.float32)             # (tm, D)
    kv = jnp.dot(x.astype(jnp.bfloat16), wkv_ref[...],
                 preferred_element_type=jnp.float32)            # (tm, 2D)
    if split_store:
        # lane-aligned disjoint stores (only used when D % 128 == 0)
        o_ref[:, :D] = q + b_ref[:, :D]
        o_ref[:, D:] = kv + b_ref[:, D:]
    else:
        o_ref[...] = jnp.concatenate([q, kv], axis=-1) + b_ref[...]


def lnqkv_proj(x, lnw, lnb, wq_t, wkv_t, bqkv):
    B, L, D = x.shape
    M = B * L
    x2 = x.reshape(M, D).astype(jnp.float32)
    tm = _tile_rows(M)
    kernel = functools.partial(_lnqkv_kernel, split_store=(D % 128 == 0))
    out = pl.pallas_call(
        kernel,
        out_shape=jax.ShapeDtypeStruct((M, 3 * D), jnp.float32),
        grid=(pl.cdiv(M, tm),),
        in_specs=[
            pl.BlockSpec((tm, D), lambda i: (i, 0)),
            pl.BlockSpec((1, D), lambda i: (0, 0)),
            pl.BlockSpec((1, D), lambda i: (0, 0)),
            pl.BlockSpec((D, D), lambda i: (0, 0)),
            pl.BlockSpec((D, 2 * D), lambda i: (0, 0)),
            pl.BlockSpec((1, 3 * D), lambda i: (0, 0)),
        ],
        out_specs=pl.BlockSpec((tm, 3 * D), lambda i: (i, 0)),
        compiler_params=_cp(),
    )(x2, lnw, lnb, wq_t, wkv_t, bqkv)
    return out.reshape(B, L, 3 * D)


# ----------------------- fused FCL + final LN + FFN (+ last LN) -----------------------
def _fcl_ffn_body(x, wf, bf, flnw, flnb, w1, b1, w2, b2):
    y0 = jnp.dot(x.astype(jnp.bfloat16), wf,
                 preferred_element_type=jnp.float32) + bf        # FCL projection
    y1 = _ln(y0, flnw, flnb)                                     # final_layer_norm
    h = jnp.maximum(jnp.dot(y1.astype(jnp.bfloat16), w1,
                            preferred_element_type=jnp.float32) + b1, 0.0)
    return y1 + jnp.dot(h.astype(jnp.bfloat16), w2,
                        preferred_element_type=jnp.float32) + b2  # FFN + residual


def _fcl_ffn_kernel(x_ref, wf_ref, bf_ref, flnw_ref, flnb_ref,
                    w1_ref, b1_ref, w2_ref, b2_ref, o_ref):
    o_ref[...] = _fcl_ffn_body(x_ref[...], wf_ref[...], bf_ref[...],
                               flnw_ref[...], flnb_ref[...],
                               w1_ref[...], b1_ref[...], w2_ref[...], b2_ref[...])


def _fcl_ffn_ln_kernel(x_ref, wf_ref, bf_ref, flnw_ref, flnb_ref,
                       w1_ref, b1_ref, w2_ref, b2_ref, llnw_ref, llnb_ref, o_ref):
    y = _fcl_ffn_body(x_ref[...], wf_ref[...], bf_ref[...],
                      flnw_ref[...], flnb_ref[...],
                      w1_ref[...], b1_ref[...], w2_ref[...], b2_ref[...])
    o_ref[...] = _ln(y, llnw_ref[...], llnb_ref[...])


def fcl_ffn_block(x, lp, ln_w=None, ln_b=None):
    B, L, D = x.shape
    M = B * L
    x2 = x.reshape(M, D)
    tm = _tile_rows(M)
    row = pl.BlockSpec((tm, D), lambda i: (i, 0))
    mat = pl.BlockSpec((D, D), lambda i: (0, 0))
    vec = pl.BlockSpec((1, D), lambda i: (0, 0))
    in_specs = [row, mat, vec, vec, vec, mat, vec, mat, vec]
    args = [x2, lp["WfclT"], lp["bfcl"], lp["f_ln_w"], lp["f_ln_b"],
            lp["W1T"], lp["b1"], lp["W2T"], lp["b2"]]
    if ln_w is not None:
        kernel = _fcl_ffn_ln_kernel
        in_specs = in_specs + [vec, vec]
        args = args + [ln_w, ln_b]
    else:
        kernel = _fcl_ffn_kernel
    out = pl.pallas_call(
        kernel,
        out_shape=jax.ShapeDtypeStruct((M, D), jnp.float32),
        grid=(pl.cdiv(M, tm),),
        in_specs=in_specs,
        out_specs=row,
        compiler_params=_cp(),
    )(*args)
    return out.reshape(B, L, D)


# ----------------------- ProbSparse attention core kernel -----------------------
# grid=(B,), all heads of one batch element per grid step.
#   - baseline = cumsum(V) / (cumsum(pad) + eps), cumsum done as a log2(L)
#     Hillis-Steele scan using pltpu.roll (XLU) masked by a row iota
#   - per head: gather the u selected query rows with a one-hot bf16 matmul,
#     scores = Qsel @ K^T * scale (bf16 MXU, f32 acc), causal + query-padding
#     mask, exact softmax, attn = P @ V (bf16 MXU), scatter back into the
#     baseline with a one-hot f32 matmul + select
#   - the whole (L, D) output block is assembled in registers and written with
#     ONE dense store
def _psa_kernel(qkv_ref, padcum_ref, idx_hu_ref, idx_uh_ref, pad_uh_ref, o_ref,
                *, H, dh, u, L, D, scale):
    x = qkv_ref[...]                                      # (L, 3D) f32, one dense load
    v_all = x[:, 2 * D:3 * D]                             # (L, D)

    # causal cumsum(V): Hillis-Steele scan, shifts on the XLU (free slot vs VPU adds)
    rows = lax.broadcasted_iota(jnp.int32, (L, D), 0)
    v_cum = v_all
    shift = 1
    while shift < L:
        v_cum = v_cum + jnp.where(rows >= shift,
                                  pltpu.roll(v_cum, shift, axis=0), 0.0)
        shift *= 2
    baseline = v_cum / (padcum_ref[...] + PSA_EPS)        # (L, D), exact division

    idx_hu = idx_hu_ref[...]                              # (H, u) int32
    idx_uh = idx_uh_ref[...]                              # (u, H) int32
    pad_uh = pad_uh_ref[...]                              # (u, H) f32

    key_iota = lax.broadcasted_iota(jnp.int32, (u, L), 1)   # key position per lane
    row_iota = lax.broadcasted_iota(jnp.int32, (L, u), 0)   # output row per sublane

    # NOTE: small static head loop (H is tiny here); switch to
    # lax.fori_loop(unroll=True) or a batched einsum if H grows.
    out_cols = []
    for h in range(H):
        q_h = x[:, h * dh:(h + 1) * dh]                   # (L, dh)
        k_h = x[:, D + h * dh:D + (h + 1) * dh]
        v_h = x[:, 2 * D + h * dh:2 * D + (h + 1) * dh]

        idx_col = idx_uh[:, h:h + 1]                      # (u, 1) selected positions
        pad_col = pad_uh[:, h:h + 1]                      # (u, 1) query padding bits
        idx_row = idx_hu[h:h + 1, :]                      # (1, u)

        # vectorized gather of the u selected query rows: one-hot (u,L) @ Q (L,dh)
        gather_oh = (key_iota == idx_col).astype(jnp.bfloat16)
        q_sel = jnp.dot(gather_oh, q_h.astype(jnp.bfloat16),
                        preferred_element_type=jnp.float32)          # (u, dh)

        scores = lax.dot_general(
            q_sel.astype(jnp.bfloat16), k_h.astype(jnp.bfloat16),
            (((1,), (1,)), ((), ())),
            preferred_element_type=jnp.float32) * scale              # (u, L)

        mask = jnp.logical_and(key_iota <= idx_col, pad_col > 0.5)
        scores = jnp.where(mask, scores, NEG_INF)

        m = jnp.max(scores, axis=-1, keepdims=True)
        e = jnp.exp(scores - m)
        p = e / jnp.sum(e, axis=-1, keepdims=True)                   # exact softmax
        attn = jnp.dot(p.astype(jnp.bfloat16), v_h.astype(jnp.bfloat16),
                       preferred_element_type=jnp.float32)           # (u, dh)

        # vectorized scatter: one-hot (L,u) @ attn (u,dh), then select vs baseline
        scatter_oh = (row_iota == idx_row).astype(jnp.float32)
        scattered = jnp.dot(scatter_oh, attn, preferred_element_type=jnp.float32)
        selected = jnp.sum(scatter_oh, axis=1, keepdims=True) > 0.5  # (L, 1)
        out_cols.append(jnp.where(selected, scattered,
                                  baseline[:, h * dh:(h + 1) * dh]))

    o_ref[...] = jnp.concatenate(out_cols, axis=-1)       # single lane-dense store


def psa_attention(qkv, pad_cum, idx_hu, idx_uh, pad_uh, *, H, dh, u, scale):
    B, L, D3 = qkv.shape
    D = D3 // 3
    kernel = functools.partial(_psa_kernel, H=H, dh=dh, u=u, L=L, D=D, scale=scale)
    return pl.pallas_call(
        kernel,
        out_shape=jax.ShapeDtypeStruct((B, L, D), jnp.float32),
        grid=(B,),
        in_specs=[
            pl.BlockSpec((None, L, 3 * D), lambda b: (b, 0, 0)),
            pl.BlockSpec((None, L, 1), lambda b: (b, 0, 0)),
            pl.BlockSpec((None, H, u), lambda b: (b, 0, 0)),
            pl.BlockSpec((None, u, H), lambda b: (b, 0, 0)),
            pl.BlockSpec((None, u, H), lambda b: (b, 0, 0)),
        ],
        out_specs=pl.BlockSpec((None, L, D), lambda b: (b, 0, 0)),
        compiler_params=_cp(("parallel",)),
    )(qkv, pad_cum, idx_hu, idx_uh, pad_uh)


# ----------------------- ProbSparseAttention layer (glue + kernels) -----------------------
def prob_sparse_attention(x, padding_mask, p, num_heads, alpha, key):
    B, L, D = x.shape
    dh = D // num_heads

    qkv = lnqkv_proj(x, p["q_ln_w"], p["q_ln_b"], p["WqT"], p["WkvT"], p["bqkv"])

    q4 = qkv[:, :, :D].reshape(B, L, num_heads, dh)
    k4 = qkv[:, :, D:2 * D].reshape(B, L, num_heads, dh)

    u = min(alpha * int(math.ceil(math.log(L))), L)
    U_part = u

    # _prob_QK sparsity-estimation sampling + top-k selection (data-dependent glue).
    # TODO(synk): torch.randint sampling replaced by deterministic jax.random
    # sampling; for large L the sampled-K gather should move in-kernel to avoid
    # materializing the (B, L, U, H, dh) intermediate in HBM.
    idx_sample = jax.random.randint(key, (L, U_part), 0, L)
    k_samp = k4.astype(jnp.bfloat16)[:, idx_sample]               # (B, L, U, H, dh)
    qk_samp = jnp.einsum("blhd,blshd->bhls",
                         q4.astype(jnp.bfloat16), k_samp,
                         preferred_element_type=jnp.float32)
    Mscore = qk_samp.max(-1) - qk_samp.sum(-1) / L                # (B, H, L)
    _, top_idx = lax.top_k(Mscore, u)                             # (B, H, u)
    top_idx = top_idx.astype(jnp.int32)

    pad_at_idx = jnp.take_along_axis(
        jnp.broadcast_to(padding_mask[:, None, :], (B, num_heads, L)).astype(jnp.float32),
        top_idx, axis=2)                                          # (B, H, u)
    pad_cum = jnp.cumsum(padding_mask.astype(jnp.float32), axis=1)[..., None]

    attn = psa_attention(
        qkv, pad_cum,
        top_idx,                                   # (B, H, u)  -> (1, u) row slices
        jnp.swapaxes(top_idx, 1, 2),               # (B, u, H)  -> (u, 1) col slices
        jnp.swapaxes(pad_at_idx, 1, 2),            # (B, u, H)
        H=num_heads, dh=dh, u=u, scale=1.0 / math.sqrt(D))
    return attn


# ----------------------- LightMSAB forward -----------------------
def light_msab_forward(x, padding_mask, params, config, store=True):
    outs = []
    H, alpha = config["lmsal_heads"], config["alpha"]
    for lp in params["layers"]:
        attn = prob_sparse_attention(x, padding_mask, lp, H, alpha, lp["sample_key"])
        if store:
            # FCL + final LN + FFN + shared last LayerNorm, all in one kernel;
            # the stored output is also the next layer's input (as in the reference).
            x = fcl_ffn_block(attn, lp, ln_w=params["last_ln_w"], ln_b=params["last_ln_b"])
            outs.append(x)
        else:
            x = fcl_ffn_block(attn, lp)
    if not store:
        x = layernorm(x, params["last_ln_w"], params["last_ln_b"])
        outs.append(x)
    return outs


# ----------------------- deterministic parameter init -----------------------
def init_params(key, config):
    D = config["hidden_dims"]

    def nrm(k, shape):
        return 0.02 * jax.random.normal(k, shape, jnp.float32)

    def wt(k, din, dout):
        # nn.Linear / Conv1d(k=1) weight (out, in) stored pre-transposed in bf16
        return nrm(k, (dout, din)).T.astype(jnp.bfloat16)

    layers = []
    for i in range(config["lmsals"]):
        k = jax.random.fold_in(key, i)
        ks = jax.random.split(k, 7)
        wq_t, wk_t, wv_t = wt(ks[0], D, D), wt(ks[1], D, D), wt(ks[2], D, D)
        layers.append(dict(
            q_ln_w=jnp.ones((1, D), jnp.float32), q_ln_b=jnp.zeros((1, D), jnp.float32),
            WqT=wq_t,
            WkvT=jnp.concatenate([wk_t, wv_t], axis=1),       # (D, 2D)
            bqkv=jnp.zeros((1, 3 * D), jnp.float32),
            WfclT=wt(ks[3], D, D), bfcl=jnp.zeros((1, D), jnp.float32),
            f_ln_w=jnp.ones((1, D), jnp.float32), f_ln_b=jnp.zeros((1, D), jnp.float32),
            W1T=wt(ks[4], D, D), b1=jnp.zeros((1, D), jnp.float32),
            W2T=wt(ks[5], D, D), b2=jnp.zeros((1, D), jnp.float32),
            sample_key=ks[6],
        ))
    return dict(layers=layers,
                last_ln_w=jnp.ones((1, D), jnp.float32),
                last_ln_b=jnp.zeros((1, D), jnp.float32))


if __name__ == "__main__":
    config = dict(hidden_dims=32, lmsal_heads=2, sal_heads=2, alpha=2,
                  lmsals=2, dropout=0.0, ffn_acti="relu")
    B, L, D = 2, 16, config["hidden_dims"]

    key = jax.random.PRNGKey(0)
    kx, kp = jax.random.split(key)
    seq_repr = jax.random.normal(kx, (B, L, D), jnp.float32)
    # padding mask (B, L): 1 = valid token, 0 = padded (second sequence right-padded)
    padding_mask = jnp.concatenate(
        [jnp.ones((1, L), jnp.float32),
         jnp.concatenate([jnp.ones((1, 12), jnp.float32),
                          jnp.zeros((1, L - 12), jnp.float32)], axis=1)],
        axis=0)

    params = init_params(kp, config)
    outs = light_msab_forward(seq_repr, padding_mask, params, config, store=True)
    jax.block_until_ready(outs)

    assert len(outs) == config["lmsals"]
    assert all(o.shape == (B, L, D) for o in outs)
    assert all(bool(jnp.all(jnp.isfinite(o))) for o in outs)
    print("KERNEL_OK")
</pallas_src>

<mosaic_0001>
module attributes {stable_mosaic.version = 11 : i64} {
  func.func @_lnqkv_kernel(%arg0: i32, %arg1: memref<32x32xf32, #tpu.memory_space<vmem>>, %arg2: memref<1x32xf32, #tpu.memory_space<vmem>>, %arg3: memref<1x32xf32, #tpu.memory_space<vmem>>, %arg4: memref<32x32xbf16, #tpu.memory_space<vmem>>, %arg5: memref<32x64xbf16, #tpu.memory_space<vmem>>, %arg6: memref<1x96xf32, #tpu.memory_space<vmem>>, %arg7: memref<32x96xf32, #tpu.memory_space<vmem>>) attributes {dimension_semantics = [#tpu.dimension_semantics<parallel>], iteration_bounds = array<i64: 1>, scalar_prefetch = 0 : i64, scratch_operands = 0 : i64, tpu.core_type = #tpu.core_type<tc>, window_params = [{transform_indices = @transform_0, window_bounds = array<i64: 32, 32>}, {pipeline_mode = #tpu.pipeline_mode<synchronous>, transform_indices = @transform_1, window_bounds = array<i64: 1, 32>}, {pipeline_mode = #tpu.pipeline_mode<synchronous>, transform_indices = @transform_2, window_bounds = array<i64: 1, 32>}, {pipeline_mode = #tpu.pipeline_mode<synchronous>, transform_indices = @transform_3, window_bounds = array<i64: 32, 32>}, {pipeline_mode = #tpu.pipeline_mode<synchronous>, transform_indices = @transform_4, window_bounds = array<i64: 32, 64>}, {pipeline_mode = #tpu.pipeline_mode<synchronous>, transform_indices = @transform_5, window_bounds = array<i64: 1, 96>}, {transform_indices = @transform_6, window_bounds = array<i64: 32, 96>}]} {
    %c0 = arith.constant 0 : index
    %c0_0 = arith.constant 0 : index
    %0 = vector.load %arg1[%c0, %c0_0] : memref<32x32xf32, #tpu.memory_space<vmem>>, vector<32x32xf32>
    %c0_1 = arith.constant 0 : index
    %c0_2 = arith.constant 0 : index
    %1 = vector.load %arg2[%c0_1, %c0_2] : memref<1x32xf32, #tpu.memory_space<vmem>>, vector<1x32xf32>
    %c0_3 = arith.constant 0 : index
    %c0_4 = arith.constant 0 : index
    %2 = vector.load %arg3[%c0_3, %c0_4] : memref<1x32xf32, #tpu.memory_space<vmem>>, vector<1x32xf32>
    %cst = arith.constant dense<0.000000e+00> : vector<32xf32>
    %3 = vector.multi_reduction <add>, %0, %cst [1] : vector<32x32xf32> to vector<32xf32>
    %4 = vector.shape_cast %3 : vector<32xf32> to vector<32x1xf32>
    %cst_5 = arith.constant 3.200000e+01 : f32
    %5 = vector.broadcast %cst_5 : f32 to vector<32x1xf32>
    %6 = arith.divf %4, %5 : vector<32x1xf32>
    %7 = vector.broadcast %6 : vector<32x1xf32> to vector<32x32xf32>
    %8 = arith.subf %0, %7 : vector<32x32xf32>
    %9 = arith.mulf %8, %8 : vector<32x32xf32>
    %cst_6 = arith.constant dense<0.000000e+00> : vector<32xf32>
    %10 = vector.multi_reduction <add>, %9, %cst_6 [1] : vector<32x32xf32> to vector<32xf32>
    %11 = vector.shape_cast %10 : vector<32xf32> to vector<32x1xf32>
    %cst_7 = arith.constant 3.200000e+01 : f32
    %12 = vector.broadcast %cst_7 : f32 to vector<32x1xf32>
    %13 = arith.divf %11, %12 : vector<32x1xf32>
    %14 = vector.broadcast %6 : vector<32x1xf32> to vector<32x32xf32>
    %15 = arith.subf %0, %14 : vector<32x32xf32>
    %cst_8 = arith.constant 9.99999993E-9 : f32
    %16 = vector.broadcast %cst_8 : f32 to vector<32x1xf32>
    %17 = arith.addf %13, %16 : vector<32x1xf32>
    %18 = math.rsqrt %17 : vector<32x1xf32>
    %19 = vector.broadcast %18 : vector<32x1xf32> to vector<32x32xf32>
    %20 = arith.mulf %15, %19 : vector<32x32xf32>
    %21 = vector.broadcast %1 : vector<1x32xf32> to vector<32x32xf32>
    %22 = arith.mulf %21, %20 : vector<32x32xf32>
    %23 = vector.broadcast %2 : vector<1x32xf32> to vector<32x32xf32>
    %24 = arith.addf %22, %23 : vector<32x32xf32>
    %25 = arith.truncf %24 : vector<32x32xf32> to vector<32x32xbf16>
    %c0_9 = arith.constant 0 : index
    %c0_10 = arith.constant 0 : index
    %26 = vector.load %arg4[%c0_9, %c0_10] : memref<32x32xbf16, #tpu.memory_space<vmem>>, vector<32x32xbf16>
    %cst_11 = arith.constant dense<0.000000e+00> : vector<32x32xf32>
    %27 = tpu.matmul %25, %26, %cst_11 {dimension_numbers = #tpu.dot_dimension_numbers<[1], [0], [0], [1], [0, 0, 1, 1], [], []>} : vector<32x32xbf16>, vector<32x32xbf16>, vector<32x32xf32> -> vector<32x32xf32>
    %28 = arith.truncf %0 : vector<32x32xf32> to vector<32x32xbf16>
    %c0_12 = arith.constant 0 : index
    %c0_13 = arith.constant 0 : index
    %29 = vector.load %arg5[%c0_12, %c0_13] : memref<32x64xbf16, #tpu.memory_space<vmem>>, vector<32x64xbf16>
    %cst_14 = arith.constant dense<0.000000e+00> : vector<32x64xf32>
    %30 = tpu.matmul %28, %29, %cst_14 {dimension_numbers = #tpu.dot_dimension_numbers<[1], [0], [0], [1], [0, 0, 1, 1], [], []>} : vector<32x32xbf16>, vector<32x64xbf16>, vector<32x64xf32> -> vector<32x64xf32>
    %31 = tpu.concatenate %27, %30 in 1 : vector<32x32xf32>, vector<32x64xf32> -> vector<32x96xf32>
    %c0_15 = arith.constant 0 : index
    %c0_16 = arith.constant 0 : index
    %32 = vector.load %arg6[%c0_15, %c0_16] : memref<1x96xf32, #tpu.memory_space<vmem>>, vector<1x96xf32>
    %33 = vector.broadcast %32 : vector<1x96xf32> to vector<32x96xf32>
    %34 = arith.addf %31, %33 : vector<32x96xf32>
    %c0_17 = arith.constant 0 : index
    %c0_18 = arith.constant 0 : index
    %35 = vector.load %arg7[%c0_17, %c0_18] : memref<32x96xf32, #tpu.memory_space<vmem>>, vector<32x96xf32>
    tpu.vector_store %arg7[%c0_17, %c0_18], %34 {strides = array<i32>} : memref<32x96xf32, #tpu.memory_space<vmem>>, vector<32x96xf32>,
    return
  }
  func.func @transform_0(%arg0: i32) -> (i32, i32) {
    %c0_i32 = arith.constant 0 : i32
    %c0_i32_0 = arith.constant 0 : i32
    return %arg0, %c0_i32 : i32, i32
  }
  func.func @transform_1(%arg0: i32) -> (i32, i32) {
    %c0_i32 = arith.constant 0 : i32
    %c0_i32_0 = arith.constant 0 : i32
    %c0_i32_1 = arith.constant 0 : i32
    return %c0_i32, %c0_i32_0 : i32, i32
  }
  func.func @transform_2(%arg0: i32) -> (i32, i32) {
    %c0_i32 = arith.constant 0 : i32
    %c0_i32_0 = arith.constant 0 : i32
    %c0_i32_1 = arith.constant 0 : i32
    return %c0_i32, %c0_i32_0 : i32, i32
  }
  func.func @transform_3(%arg0: i32) -> (i32, i32) {
    %c0_i32 = arith.constant 0 : i32
    %c0_i32_0 = arith.constant 0 : i32
    %c0_i32_1 = arith.constant 0 : i32
    return %c0_i32, %c0_i32_0 : i32, i32
  }
  func.func @transform_4(%arg0: i32) -> (i32, i32) {
    %c0_i32 = arith.constant 0 : i32
    %c0_i32_0 = arith.constant 0 : i32
    %c0_i32_1 = arith.constant 0 : i32
    return %c0_i32, %c0_i32_0 : i32, i32
  }
  func.func @transform_5(%arg0: i32) -> (i32, i32) {
    %c0_i32 = arith.constant 0 : i32
    %c0_i32_0 = arith.constant 0 : i32
    %c0_i32_1 = arith.constant 0 : i32
    return %c0_i32, %c0_i32_0 : i32, i32
  }
  func.func @transform_6(%arg0: i32) -> (i32, i32) {
    %c0_i32 = arith.constant 0 : i32
    %c0_i32_0 = arith.constant 0 : i32
    return %arg0, %c0_i32 : i32, i32
  }
}

</mosaic_0001>

<llo_original>
// kernel: tpu_custom_call.1
$region0: #{tpu_custom_call.1}
  #allocation0 [shape = 'u32[]', space=smem, size = 0x4, offset = 0x4, fixed_abs, tag = 'smem constant byte address 0x4 - core index']
  #allocation1 [shape = 'u32[72,128]{1,0:T(1,128)}', space=vmem, size = 0x9000, scoped, tag = 'internal scratch']
  %s0 = inlined_call_operand.hbm [shape: f32[32,32], index: 0, kind: input, shape index: {}]
  %s1 = inlined_call_operand.hbm [shape: f32[1,32], index: 1, kind: input, shape index: {}]
  %s2 = inlined_call_operand.vmem [shape: f32[1,32], index: 2, kind: input, shape index: {}]
  %s3 = inlined_call_operand.hbm [shape: bf16[32,32], index: 3, kind: input, shape index: {}]
  %s4 = inlined_call_operand.hbm [shape: bf16[32,64], index: 4, kind: input, shape index: {}]
  %s5 = inlined_call_operand.vmem [shape: f32[1,96], index: 5, kind: input, shape index: {}]
  %s6 = inlined_call_operand.hbm [shape: f32[32,96], index: 6, kind: output, shape index: {}]
  %s7 = sld [smem:[#allocation0]]
  $region50: #{tpu_custom_call.1} parent=0
    _
  %s9 = ssub.s32 1, %s7
  %s10 = scalar_select 0, %s9, %s7
  $region1: #{tpu_custom_call.1} parent=0
    #allocation2 [shape = 'u8[16384]{0}', space=vmem, size = 0x4000, scoped, tag = 'input window, operand 0, single buffered']
    #allocation3 [shape = 's32[1]{0}', space=sflag, size = 0x4, scoped, tag = 'scoped memory for tpu_custom_call.1']
    #allocation4 [shape = 's32[1]{0}', space=sflag, size = 0x4, scoped, tag = 'scoped memory for tpu_custom_call.1']
    #allocation5 [shape = 'u8[512]{0}', space=vmem, size = 0x400, scoped, tag = 'input window, operand 1, single buffered']
    #allocation6 [shape = 's32[1]{0}', space=sflag, size = 0x4, scoped, tag = 'scoped memory for tpu_custom_call.1']
    #allocation7 [shape = 'u8[8192]{0}', space=vmem, size = 0x2000, scoped, tag = 'input window, operand 3, single buffered']
    #allocation8 [shape = 'u8[8192]{0}', space=vmem, size = 0x2000, scoped, tag = 'input window, operand 4, single buffered']
    #allocation9 [shape = 's32[1]{0}', space=sflag, size = 0x4, scoped, tag = 'scoped memory for tpu_custom_call.1']
    #allocation10 [shape = 'u8[16384]{0}', space=vmem, size = 0x4000, scoped, tag = 'output window, operand 0, single buffered']
    %11 = vsyncpa [#allocation3], 0
    %12 = vsyncpa [#allocation6], 0
    %13 = vsyncpa [#allocation9], 0
    %14 = vsyncpa [#allocation4], 0
    // Predicated region
    $region2: #{tpu_custom_call.1} parent=1 // pred_check
      _
    $region3: #{tpu_custom_call.1} parent=1 // pred_check_branch
      %16 = sbr.rel (0) target = $region5
    $region4: #{tpu_custom_call.1} parent=1 // pred_region
      %18 = vsyncadd [#allocation3], 0
      %s19 = sshll.u32 %s0, 4
      %s20 = int_to_ptr.hbm [resolvable:$true] %s19
      %s21 = sshll.u32 [#allocation2], 4
      %s22 = int_to_ptr.vmem [resolvable:$true] %s21
      %27 = dma.hbm_to_vmem [thread:$0]  %s20, 512, %s22, [#allocation3], 128, 128, 8
    $region5: #{tpu_custom_call.1} parent=1 // pred_fallthru
      _
    // Predicated region
    $region6: #{tpu_custom_call.1} parent=1 // pred_check
      _
    $region7: #{tpu_custom_call.1} parent=1 // pred_check_branch
      %29 = sbr.rel (0) target = $region9
    $region8: #{tpu_custom_call.1} parent=1 // pred_region
      %31 = vsyncadd [#allocation6], 0
      %s33 = sshll.u32 %s1, 4
      %s34 = int_to_ptr.hbm [resolvable:$true] %s33
      %s35 = sshll.u32 [#allocation5], 4
      %s36 = int_to_ptr.vmem [resolvable:$true] %s35
      %38 = dma.hbm_to_vmem [thread:$0]  %s34, 16, %s36, [#allocation6]
    $region9: #{tpu_custom_call.1} parent=1 // pred_fallthru
      _
    // Predicated region
    $region10: #{tpu_custom_call.1} parent=1 // pred_check
      _
    $region11: #{tpu_custom_call.1} parent=1 // pred_check_branch
      %40 = sbr.rel (0) target = $region13
    $region12: #{tpu_custom_call.1} parent=1 // pred_region
      _
    $region13: #{tpu_custom_call.1} parent=1 // pred_fallthru
      _
    // Predicated region
    $region14: #{tpu_custom_call.1} parent=1 // pred_check
      _
    $region15: #{tpu_custom_call.1} parent=1 // pred_check_branch
      %42 = sbr.rel (0) target = $region17
    $region16: #{tpu_custom_call.1} parent=1 // pred_region
      %44 = vsyncadd [#allocation6], 0
      %s45 = sshll.u32 %s3, 4
      %s46 = int_to_ptr.hbm [resolvable:$true] %s45
      %s47 = sshll.u32 [#allocation7], 4
      %s48 = int_to_ptr.vmem [resolvable:$true] %s47
      %53 = dma.hbm_to_vmem [thread:$0]  %s46, 256, %s48, [#allocation6], 64, 64, 4
    $region17: #{tpu_custom_call.1} parent=1 // pred_fallthru
      _
    // Predicated region
    $region18: #{tpu_custom_call.1} parent=1 // pred_check
      _
    $region19: #{tpu_custom_call.1} parent=1 // pred_check_branch
      %55 = sbr.rel (0) target = $region21
    $region20: #{tpu_custom_call.1} parent=1 // pred_region
      %57 = vsyncadd [#allocation9], 0
      %s58 = sshll.u32 %s4, 4
      %s59 = int_to_ptr.hbm [resolvable:$true] %s58
      %s60 = sshll.u32 [#allocation8], 4
      %s61 = int_to_ptr.vmem [resolvable:$true] %s60
      %66 = dma.hbm_to_vmem [thread:$0]  %s59, 256, %s61, [#allocation9], 64, 64, 4
    $region21: #{tpu_custom_call.1} parent=1 // pred_fallthru
      _
    // Predicated region
    $region22: #{tpu_custom_call.1} parent=1 // pred_check
      _
    $region23: #{tpu_custom_call.1} parent=1 // pred_check_branch
      %68 = sbr.rel (0) target = $region25
    $region24: #{tpu_custom_call.1} parent=1 // pred_region
      _
    $region25: #{tpu_custom_call.1} parent=1 // pred_fallthru
      _
    // Predicated region
    $region26: #{tpu_custom_call.1} parent=1 // pred_check
      _
    $region27: #{tpu_custom_call.1} parent=1 // pred_check_branch
      %70 = sbr.rel (0) target = $region29
    $region28: #{tpu_custom_call.1} parent=1 // pred_region
      %72 = dma.done [#allocation3], 512
    $region29: #{tpu_custom_call.1} parent=1 // pred_fallthru
      _
    // Predicated region
    $region30: #{tpu_custom_call.1} parent=1 // pred_check
      _
    $region31: #{tpu_custom_call.1} parent=1 // pred_check_branch
      %74 = sbr.rel (0) target = $region33
    $region32: #{tpu_custom_call.1} parent=1 // pred_region
      %76 = dma.done [#allocation6], 16
    $region33: #{tpu_custom_call.1} parent=1 // pred_fallthru
      _
    // Predicated region
    $region34: #{tpu_custom_call.1} parent=1 // pred_check
      _
    $region35: #{tpu_custom_call.1} parent=1 // pred_check_branch
      %78 = sbr.rel (0) target = $region37
    $region36: #{tpu_custom_call.1} parent=1 // pred_region
      %80 = dma.done [#allocation6], 256
    $region37: #{tpu_custom_call.1} parent=1 // pred_fallthru
      _
    // Predicated region
    $region38: #{tpu_custom_call.1} parent=1 // pred_check
      _
    $region39: #{tpu_custom_call.1} parent=1 // pred_check_branch
      %82 = sbr.rel (0) target = $region41
    $region40: #{tpu_custom_call.1} parent=1 // pred_region
      %84 = dma.done [#allocation9], 256
    $region41: #{tpu_custom_call.1} parent=1 // pred_fallthru
      _
    %v86 = vld [vmem:[#allocation2] sm:$0xff]
    %v87 = vld [vmem:[#allocation2 + $0x8] sm:$0xff]
    %v88 = vld [vmem:[#allocation2 + $0x10] sm:$0xff]
    %v89 = vld [vmem:[#allocation2 + $0x18] sm:$0xff]
    %v90 = vld [vmem:[#allocation5] sm:$0x1]
    %v91 = vld [vmem:[%s2] sm:$0x1]
    %vm92 = vcmask 261120
    %v93 = vsel %vm92, %v86, 0.0
    %94 = vadd.xlane.f32.xlu0 %v93
    %v95 = vpop.xlane.xlu0 %94
    %v96 = vsel %vm92, %v87, 0.0
    %97 = vadd.xlane.f32.xlu0 %v96
    %v98 = vpop.xlane.xlu0 %97
    %v99 = vsel %vm92, %v88, 0.0
    %100 = vadd.xlane.f32.xlu0 %v99
    %v101 = vpop.xlane.xlu0 %100
    %v102 = vsel %vm92, %v89, 0.0
    %103 = vadd.xlane.f32.xlu0 %v102
    %v104 = vpop.xlane.xlu0 %103
    %v105 = vrcp.pop 32.0
    %v106 = vmul.f32 32.0, %v105
    %v107 = vsub.f32 1.0, %v106
    %v108 = vmul.f32 %v105, %v107
    %v109 = vadd.f32 %v105, %v108
    %vm110 = vweird.f32 %v105
    %v111 = vsel %vm110, %v105, %v109
    %v112 = vmul.f32 %v95, %v111
    %v113 = vmul.f32 %v98, %v111
    %v114 = vmul.f32 %v101, %v111
    %v115 = vmul.f32 %v104, %v111
    %v116 = vsub.f32 %v86, %v112
    %v117 = vsub.f32 %v87, %v113
    %v118 = vsub.f32 %v88, %v114
    %v119 = vsub.f32 %v89, %v115
    %v120 = vmul.f32 %v116, %v116
    %v121 = vmul.f32 %v117, %v117
    %v122 = vmul.f32 %v118, %v118
    %v123 = vmul.f32 %v119, %v119
    %v124 = vsel %vm92, %v120, 0.0
    %125 = vadd.xlane.f32.xlu0 %v124
    %v126 = vpop.xlane.xlu0 %125
    %v127 = vsel %vm92, %v121, 0.0
    %128 = vadd.xlane.f32.xlu0 %v127
    %v129 = vpop.xlane.xlu0 %128
    %v130 = vsel %vm92, %v122, 0.0
    %131 = vadd.xlane.f32.xlu0 %v130
    %v132 = vpop.xlane.xlu0 %131
    %v133 = vsel %vm92, %v123, 0.0
    %134 = vadd.xlane.f32.xlu0 %v133
    %v135 = vpop.xlane.xlu0 %134
    %v136 = vmul.f32 %v126, %v111
    %v137 = vmul.f32 %v129, %v111
    %v138 = vmul.f32 %v132, %v111
    %v139 = vmul.f32 %v135, %v111
    %v140 = vadd.f32 %v136, 1e-08
    %v141 = vadd.f32 %v137, 1e-08
    %v142 = vadd.f32 %v138, 1e-08
    %v143 = vadd.f32 %v139, 1e-08
    %v144 = vrsqrt.pop %v140
    %v145 = vmul.f32 %v144, %v140
    %v146 = vmul.f32 %v145, %v144
    %v147 = vmul.f32 0.5, %v146
    %v148 = vsub.f32 1.5, %v147
    %v149 = vmul.f32 %v144, %v148
    %vm150 = vweird.f32 %v140
    %vm151 = vweird.f32 %v144
    %vm152 = vmor %vm150, %vm151
    %v153 = vsel %vm152, %v144, %v149
    %v154 = vrsqrt.pop %v141
    %v155 = vmul.f32 %v154, %v141
    %v156 = vmul.f32 %v155, %v154
    %v157 = vmul.f32 0.5, %v156
    %v158 = vsub.f32 1.5, %v157
    %v159 = vmul.f32 %v154, %v158
    %vm160 = vweird.f32 %v141
    %vm161 = vweird.f32 %v154
    %vm162 = vmor %vm160, %vm161
    %v163 = vsel %vm162, %v154, %v159
    %v164 = vrsqrt.pop %v142
    %v165 = vmul.f32 %v164, %v142
    %v166 = vmul.f32 %v165, %v164
    %v167 = vmul.f32 0.5, %v166
    %v168 = vsub.f32 1.5, %v167
    %v169 = vmul.f32 %v164, %v168
    %vm170 = vweird.f32 %v142
    %vm171 = vweird.f32 %v164
    %vm172 = vmor %vm170, %vm171
    %v173 = vsel %vm172, %v164, %v169
    %v174 = vrsqrt.pop %v143
    %v175 = vmul.f32 %v174, %v143
    %v176 = vmul.f32 %v175, %v174
    %v177 = vmul.f32 0.5, %v176
    %v178 = vsub.f32 1.5, %v177
    %v179 = vmul.f32 %v174, %v178
    %vm180 = vweird.f32 %v143
    %vm181 = vweird.f32 %v174
    %vm182 = vmor %vm180, %vm181
    %v183 = vsel %vm182, %v174, %v179
    %v184 = vmul.f32 %v116, %v153
    %v185 = vmul.f32 %v117, %v163
    %v186 = vmul.f32 %v118, %v173
    %v187 = vmul.f32 %v119, %v183
    %v189 = vperm.slane %v90, 0
    %v191 = vmul.f32 %v189, %v184
    %v192 = vmul.f32 %v189, %v185
    %v193 = vmul.f32 %v189, %v186
    %v194 = vmul.f32 %v189, %v187
    %v196 = vperm.slane %v91, 0
    %v198 = vadd.f32 %v191, %v196
    %v199 = vadd.f32 %v192, %v196
    %v200 = vadd.f32 %v193, %v196
    %v201 = vadd.f32 %v194, %v196
    %v202 = vpack.c.bf16 %v199, %v198
    %v203 = vpack.c.bf16 %v201, %v200
    %v204 = vld [vmem:[#allocation7] sm:$0xf]
    %v205 = vld [vmem:[#allocation7 + $0x4] sm:$0xf]
    %v206 = vld [vmem:[#allocation7 + $0x8] sm:$0xf]
    %v207 = vld [vmem:[#allocation7 + $0xc] sm:$0xf]
    %v212 = vunpack.c.l.b16 %v204
    %v213 = vunpack.c.l.b16 %v205
    %v214 = vunpack.c.l.b16 %v206
    %v215 = vunpack.c.l.b16 %v207
    %v216 = vpack.c.b16 %v213, %v212
    %v217 = vpack.c.b16 %v215, %v214
    %v221 = vsel %vm92, %v202, 0
    %v224 = vsel %vm92, %v203, 0
    %226 = vmatpush.bf16.msra.mxu0 0
    %227 = vmatpush.bf16.msra.mxu0 0
    %228 = vmatpush.bf16.msra.mxu0 0
    %229 = vmatpush.bf16.msra.mxu0 0
    %230 = vmatpush.bf16.msra.mxu0 0
    %231 = vmatpush.bf16.msra.mxu0 0
    %232 = vmatpush.bf16.msra.mxu0 %v217
    %233 = vmatpush.bf16.msra.mxu0 %v216
    %234 = vmatmul.bf16.gmra.mxu0 %v221
    %v235 = vpop.f32.mrf.mxu0
    %v236 = vadd.f32 0.0, %v235
    %v237 = vpop.f32.mrf.mxu0
    %v238 = vadd.f32 0.0, %v237
    %239 = vmatmul.bf16.gmra.mxu0 %v224
    %v240 = vpop.f32.mrf.mxu0
    %v241 = vadd.f32 0.0, %v240
    %v242 = vpop.f32.mrf.mxu0
    %v243 = vadd.f32 0.0, %v242
    %244 = vdwg.mxu0
    %v245 = vpack.c.bf16 %v87, %v86
    %v246 = vpack.c.bf16 %v89, %v88
    %v247 = vld [vmem:[#allocation8] sm:$0xf]
    %v248 = vld [vmem:[#allocation8 + $0x4] sm:$0xf]
    %v249 = vld [vmem:[#allocation8 + $0x8] sm:$0xf]
    %v250 = vld [vmem:[#allocation8 + $0xc] sm:$0xf]
    %v255 = vunpack.c.l.b16 %v247
    %v256 = vunpack.c.l.b16 %v248
    %v257 = vunpack.c.l.b16 %v249
    %v258 = vunpack.c.l.b16 %v250
    %v259 = vpack.c.b16 %v256, %v255
    %v260 = vpack.c.b16 %v258, %v257
    %v264 = vsel %vm92, %v245, 0
    %v267 = vsel %vm92, %v246, 0
    %269 = vmatpush.bf16.msra.mxu0 0
    %270 = vmatpush.bf16.msra.mxu0 0
    %271 = vmatpush.bf16.msra.mxu0 0
    %272 = vmatpush.bf16.msra.mxu0 0
    %273 = vmatpush.bf16.msra.mxu0 0
    %274 = vmatpush.bf16.msra.mxu0 0
    %275 = vmatpush.bf16.msra.mxu0 %v260
    %276 = vmatpush.bf16.msra.mxu0 %v259
    %277 = vmatmul.bf16.gmra.mxu0 %v264
    %v278 = vpop.f32.mrf.mxu0
    %v279 = vadd.f32 0.0, %v278
    %v280 = vpop.f32.mrf.mxu0
    %v281 = vadd.f32 0.0, %v280
    %282 = vmatmul.bf16.gmra.mxu0 %v267
    %v283 = vpop.f32.mrf.mxu0
    %v284 = vadd.f32 0.0, %v283
    %v285 = vpop.f32.mrf.mxu0
    %v286 = vadd.f32 0.0, %v285
    %287 = vdwg.mxu0
    %292 = vrot.lane.b32.xlu0 %v279, 32
    %v293 = vpop.permute.xlu0 %292
    %294 = vrot.lane.b32.xlu0 %v281, 32
    %v295 = vpop.permute.xlu0 %294
    %296 = vrot.lane.b32.xlu0 %v284, 32
    %v297 = vpop.permute.xlu0 %296
    %298 = vrot.lane.b32.xlu0 %v286, 32
    %v299 = vpop.permute.xlu0 %298
    %v304 = vsel %vm92, %v236, %v293
    %v305 = vsel %vm92, %v238, %v295
    %v306 = vsel %vm92, %v241, %v297
    %v307 = vsel %vm92, %v243, %v299
    %v308 = vld [vmem:[%s5] sm:$0x1]
    %v310 = vperm.slane %v308, 0
    %v312 = vadd.f32 %v304, %v310
    %v313 = vadd.f32 %v305, %v310
    %v314 = vadd.f32 %v306, %v310
    %v315 = vadd.f32 %v307, %v310
    %vm316 = vcmask 785408
    %317 = vst.msk [vmem:[#allocation10] sm:$0xff] %vm316, %v312
    %318 = vst.msk [vmem:[#allocation10 + $0x8] sm:$0xff] %vm316, %v313
    %319 = vst.msk [vmem:[#allocation10 + $0x10] sm:$0xff] %vm316, %v314
    %320 = vst.msk [vmem:[#allocation10 + $0x18] sm:$0xff] %vm316, %v315
    // Predicated region
    $region42: #{tpu_custom_call.1} parent=1 // pred_check
      _
    $region43: #{tpu_custom_call.1} parent=1 // pred_check_branch
      %322 = sbr.rel (0) target = $region45
    $region44: #{tpu_custom_call.1} parent=1 // pred_region
      %324 = vsyncadd [#allocation4], 0
      %s325 = sshll.u32 [#allocation10], 4
      %s326 = int_to_ptr.vmem [resolvable:$true] %s325
      %s327 = sshll.u32 %s6, 4
      %s328 = int_to_ptr.hbm [resolvable:$true] %s327
      %333 = dma.vmem_to_hbm [thread:$0]  %s326, 512, %s328, [#allocation4], 128, 128, 8
    $region45: #{tpu_custom_call.1} parent=1 // pred_fallthru
      _
    // Predicated region
    $region46: #{tpu_custom_call.1} parent=1 // pred_check
      _
    $region47: #{tpu_custom_call.1} parent=1 // pred_check_branch
      %335 = sbr.rel (0) target = $region49
    $region48: #{tpu_custom_call.1} parent=1 // pred_region
      %337 = dma.done [#allocation4], 512
    $region49: #{tpu_custom_call.1} parent=1 // pred_fallthru
      _
    %338 = vsyncpa [#allocation3], 1
    %339 = vsyncpa [#allocation6], 1
    %340 = vsyncpa [#allocation9], 1
    %341 = vsyncpa [#allocation4], 1

</llo_original>
